<compile_context>
chip_gen: v5e
topology: v5e:2x2
jax: 0.10.0
libtpu: 0.0.40
codegen_flags: <defaults>
</compile_context>

<pallas_src>
import functools

import jax
import jax.numpy as jnp
from jax.experimental import pallas as pl
from jax.experimental.pallas import tpu as pltpu

MXU_DTYPE = jnp.bfloat16      # matmul operand dtype (set jnp.float32 for exact-f32 parity)
_NEG = -1e30                  # finite "-inf" (avoids inf-inf NaNs)
_INV_TEMP = 1.0 / 0.07        # hndc temperature


def _vmem_limit_bytes():
    """Scoped-VMEM request derived from physical capacity (v7x: 64 MiB)."""
    cap = 64 * 1024 * 1024
    try:
        cap = int(pltpu.get_tpu_info().vmem_capacity_bytes)
    except Exception:
        pass
    return min((cap * 3) // 4, 112 * 1024 * 1024)


def _pick_tile(n, per_row_bytes, budget_bytes):
    """Largest row tile (multiple of 16, bf16-friendly) dividing n that fits."""
    fallback = None
    for t in (512, 256, 128, 64, 32, 16):
        if n % t == 0:
            fallback = t                       # keeps shrinking -> smallest divider
            if t * per_row_bytes <= budget_bytes:
                return t
    return fallback if fallback is not None else n


# ----------------------------------------------------------------------------
# Kernel A: fused itc (image->text and text->image) + cmr + imc.
# Grid: row tiles of the image batch, fully "parallel" (per-tile partial outs).
# ----------------------------------------------------------------------------
def _fused_itc_cmr_imc_kernel(scale_ref, img_ref, da4_ref, mask_ref, thr_ref,
                              gt_ref, daf_ref,
                              o_rowce, o_diag, o_cmr, o_imc,
                              o_dasum, o_dacnt, o_colmax, o_colsum):
    i = pl.program_id(0)
    tm = img_ref.shape[0]
    dsz = img_ref.shape[1]
    b = gt_ref.shape[0]
    s = scale_ref[0, 0]
    f32 = jnp.float32

    img = img_ref[...]                                   # (tm, D) bf16
    img_f = img.astype(f32)
    img_s = (img_f * s).astype(img.dtype)                # logit_scale folded into the small operand

    # gt-text rows of this tile, sliced from the resident gt block
    # (no extra per-step HBM stream / double buffer).
    row0 = pl.multiple_of(i * tm, tm)
    gtt = gt_ref[pl.ds(row0, tm), :]                     # (tm, D) bf16
    gtt_f = gtt.astype(f32)

    # diag(logits_per_image) via a direct row dot: O(tm*D), no (tm, B) iota mask.
    diag = jnp.sum(img_f * gtt_f, axis=1, keepdims=True) * s          # (tm, 1)

    dims = (((1,), (1,)), ((), ()))
    lg = jax.lax.dot_general(img_s, gt_ref[...], dims,
                             preferred_element_type=f32)              # (tm, B)
    ld = jax.lax.dot_general(img_s, daf_ref[...], dims,
                             preferred_element_type=f32)              # (tm, 4B)

    # ---- itc, image->text: CE over the 5B-wide row (hardnegative=True).
    m = jnp.maximum(jnp.max(lg, axis=1, keepdims=True),
                    jnp.max(ld, axis=1, keepdims=True))
    se = (jnp.sum(jnp.exp(lg - m), axis=1, keepdims=True)
          + jnp.sum(jnp.exp(ld - m), axis=1, keepdims=True))
    row_lse = m + jnp.log(se)
    o_rowce[...] = jnp.sum(row_lse - diag, keepdims=True).reshape(1, 1, 1)
    o_diag[...] = jnp.sum(diag, keepdims=True).reshape(1, 1, 1)

    # ---- itc, text->image: logits_per_text is the transpose of lg; emit this
    # tile's per-column max / exp-sum; cross-tile merge happens in the wrapper.
    cmax = jnp.max(lg, axis=0, keepdims=True)                          # (1, B)
    csum = jnp.sum(jnp.exp(lg - cmax), axis=0, keepdims=True)          # (1, B)
    o_colmax[...] = cmax.reshape(1, 1, b)
    o_colsum[...] = csum.reshape(1, 1, b)

    # ---- cmr: da logits via a row-aligned direct dot, O(tm*4*D)
    # (da4_ref row r = the 4 distractors of image row r, concatenated on D).
    da_flat = da4_ref[...].astype(f32)                                 # (tm, 4*D)
    lane4 = jax.lax.broadcasted_iota(jnp.int32, (tm, 4), 1)
    da_vals = jnp.zeros((tm, 4), f32)
    for j in range(4):
        dj = da_flat[:, j * dsz:(j + 1) * dsz]                         # (tm, D)
        vj = jnp.sum(dj * img_f, axis=1, keepdims=True)                # (tm, 1)
        da_vals = da_vals + jnp.where(lane4 == j, vj, 0.0)
    da_vals = da_vals * s
    mask_v = mask_ref[...]                                             # (tm, 4)
    da_masked = da_vals * mask_v
    cmr = jnp.maximum(thr_ref[...] + da_masked - diag, 0.0) * mask_v
    o_cmr[...] = jnp.sum(cmr, keepdims=True).reshape(1, 1, 1)
    o_dasum[...] = jnp.sum(da_masked, axis=0, keepdims=True).reshape(1, 1, 4)
    o_dacnt[...] = jnp.sum((da_masked != 0.0).astype(f32), axis=0,
                           keepdims=True).reshape(1, 1, 4)

    # ---- imc: CE(scale * gt_rows @ da_text.T, label 0) for this row tile.
    gtt_s = (gtt_f * s).astype(gtt.dtype)
    li = jax.lax.dot_general(gtt_s, daf_ref[...], dims,
                             preferred_element_type=f32)               # (tm, 4B)
    mi = jnp.max(li, axis=1, keepdims=True)
    lse_i = mi + jnp.log(jnp.sum(jnp.exp(li - mi), axis=1, keepdims=True))
    o_imc[...] = jnp.sum(lse_i - li[:, 0:1], keepdims=True).reshape(1, 1, 1)


# ----------------------------------------------------------------------------
# Kernel B: self-similarity + hndc cross-entropy (inputs pre-normalized).
# Grid: row tiles of the 4B distractor captions, "parallel".
# ----------------------------------------------------------------------------
def _fused_hndc_kernel(tn, xn_ref, o_sum):
    i = pl.program_id(0)
    n = xn_ref.shape[0]
    f32 = jnp.float32

    row0 = pl.multiple_of(i * tn, tn)
    xr = xn_ref[pl.ds(row0, tn), :]                       # (tn, D), already L2-normalized
    xr_s = (xr.astype(f32) * _INV_TEMP).astype(xr.dtype)  # 1/temperature folded
    sim = jax.lax.dot_general(xr_s, xn_ref[...], (((1,), (1,)), ((), ())),
                              preferred_element_type=f32)              # (tn, N)

    row_g = jax.lax.broadcasted_iota(jnp.int32, (tn, 1), 0) + i * tn
    col_n = jax.lax.broadcasted_iota(jnp.int32, (tn, n), 1)
    sim_m = jnp.where(col_n == row_g, _NEG, sim)          # drop self-similarity
    m = jnp.max(sim_m, axis=1, keepdims=True)
    lse = m + jnp.log(jnp.sum(jnp.exp(sim_m - m), axis=1, keepdims=True))
    # "fake positive" = column 0 of the off-diagonal row: sim[r,0] (r>0), sim[0,1].
    tgt = jnp.where(row_g == 0, sim[:, 1:2], sim[:, 0:1])
    o_sum[...] = jnp.sum(lse - tgt, keepdims=True).reshape(1, 1, 1)


# ----------------------------------------------------------------------------
# Forward pass (world_size == 1 branch of Clip_DA_all_hn_far_Loss.forward)
# ----------------------------------------------------------------------------
def clip_da_all_hn_far_loss(image_features, text_features, valid_caption_mask,
                            logit_scale, thresholds,
                            cmr_loss_weight=0.2, imc_loss_weight=0.2,
                            hndc_loss_weight=1.0):
    b, d = image_features.shape
    assert text_features.shape[0] == 5 * b
    n_da = 4 * b
    f32 = jnp.float32

    gt_text = text_features[:b]
    da_text = text_features[b:]

    img_m = image_features.astype(MXU_DTYPE)
    gt_m = gt_text.astype(MXU_DTYPE)
    da_m = da_text.astype(MXU_DTYPE)
    da4_m = da_m.reshape(b, 4 * d)          # row r = 4 distractors of image r (free reshape)
    mask = valid_caption_mask.astype(f32)
    thr = thresholds.astype(f32)
    scale = jnp.reshape(jnp.asarray(logit_scale, f32), (1, 1))

    vmem_limit = _vmem_limit_bytes()

    # ---- Kernel A: itc + cmr + imc ---------------------------------------
    resident_a = 2 * (5 * b * d) * 2                       # gt + da residents, 2x buffered, bf16
    per_row_a = 40 * d + 80 * b                            # streams + f32 logits tiles (rough)
    tm = _pick_tile(b, per_row_a, max(vmem_limit - resident_a - (8 << 20), 0))
    nb = b // tm if b % tm == 0 else 1
    if b % tm != 0:
        tm = b

    outs = pl.pallas_call(
        _fused_itc_cmr_imc_kernel,
        grid=(nb,),
        in_specs=[
            pl.BlockSpec(memory_space=pltpu.MemorySpace.SMEM),         # logit_scale
            pl.BlockSpec((tm, d), lambda i: (i, 0)),                   # image rows
            pl.BlockSpec((tm, 4 * d), lambda i: (i, 0)),               # per-image distractor rows
            pl.BlockSpec((tm, 4), lambda i: (i, 0)),                   # valid mask
            pl.BlockSpec((tm, 4), lambda i: (i, 0)),                   # thresholds
            pl.BlockSpec((b, d), lambda i: (0, 0)),                    # gt_text (resident)
            pl.BlockSpec((n_da, d), lambda i: (0, 0)),                 # da_text (resident)
        ],
        out_specs=(
            pl.BlockSpec((1, 1, 1), lambda i: (i, 0, 0)),              # row-CE partial
            pl.BlockSpec((1, 1, 1), lambda i: (i, 0, 0)),              # diag partial
            pl.BlockSpec((1, 1, 1), lambda i: (i, 0, 0)),              # cmr partial
            pl.BlockSpec((1, 1, 1), lambda i: (i, 0, 0)),              # imc partial
            pl.BlockSpec((1, 1, 4), lambda i: (i, 0, 0)),              # da col sums
            pl.BlockSpec((1, 1, 4), lambda i: (i, 0, 0)),              # da nonzero counts
            pl.BlockSpec((1, 1, b), lambda i: (i, 0, 0)),              # per-tile column max
            pl.BlockSpec((1, 1, b), lambda i: (i, 0, 0)),              # per-tile column exp-sum
        ),
        out_shape=(
            jax.ShapeDtypeStruct((nb, 1, 1), f32),
            jax.ShapeDtypeStruct((nb, 1, 1), f32),
            jax.ShapeDtypeStruct((nb, 1, 1), f32),
            jax.ShapeDtypeStruct((nb, 1, 1), f32),
            jax.ShapeDtypeStruct((nb, 1, 4), f32),
            jax.ShapeDtypeStruct((nb, 1, 4), f32),
            jax.ShapeDtypeStruct((nb, 1, b), f32),
            jax.ShapeDtypeStruct((nb, 1, b), f32),
        ),
        compiler_params=pltpu.CompilerParams(
            dimension_semantics=("parallel",),
            vmem_limit_bytes=vmem_limit),
    )(scale, img_m, da4_m, mask, thr, gt_m, da_m)
    (rowce_p, diag_p, cmr_p, imc_p, dasum_p, dacnt_p, colmax_p, colsum_p) = outs

    rowce_sum = jnp.sum(rowce_p)
    diag_sum = jnp.sum(diag_p)
    cmr_sum = jnp.sum(cmr_p)
    imc_sum = jnp.sum(imc_p)
    da_sum = jnp.sum(dasum_p[:, 0, :], axis=0)                         # (4,)
    da_cnt = jnp.sum(dacnt_p[:, 0, :], axis=0)                         # (4,)

    # Merge per-tile column-LSE partials (text->image direction).
    cmax_t = colmax_p[:, 0, :]                                         # (nb, B)
    csum_t = colsum_p[:, 0, :]
    gmax = jnp.max(cmax_t, axis=0)                                     # (B,)
    gsum = jnp.sum(csum_t * jnp.exp(cmax_t - gmax[None, :]), axis=0)   # (B,)
    col_lse = gmax + jnp.log(gsum)

    img_ce = rowce_sum / b
    txt_ce = jnp.mean(col_lse) - diag_sum / b
    itc_loss = 0.5 * (img_ce + txt_ce)
    cmr_loss = cmr_sum / (b * 4)
    imc_loss = imc_sum / b
    # 'mean' threshold update (matches the reference, incl. its zero-count behavior).
    thr_row = diag_sum / b - da_sum / da_cnt                           # (4,)
    thresholds_new = jnp.broadcast_to(thr_row.reshape(1, 4), (b, 4))

    # ---- Kernel B: hndc ---------------------------------------------------
    # L2 normalization hoisted out of the grid (done once, in f32).
    da_f = da_text.astype(f32)
    da_norm = da_f * jax.lax.rsqrt(
        jnp.maximum(jnp.sum(da_f * da_f, axis=-1, keepdims=True), 1e-24))
    xn_m = da_norm.astype(MXU_DTYPE)

    resident_b = (n_da * d) * 2 * 2
    per_row_b = 4 * d + 48 * b                                         # sim row + temps (rough)
    tn = _pick_tile(n_da, per_row_b, max(vmem_limit - resident_b - (8 << 20), 0))
    if n_da % tn != 0:
        tn = n_da
    nbn = n_da // tn

    hndc_p = pl.pallas_call(
        functools.partial(_fused_hndc_kernel, tn),
        grid=(nbn,),
        in_specs=[pl.BlockSpec((n_da, d), lambda i: (0, 0))],          # normalized da (resident)
        out_specs=pl.BlockSpec((1, 1, 1), lambda i: (i, 0, 0)),
        out_shape=jax.ShapeDtypeStruct((nbn, 1, 1), f32),
        compiler_params=pltpu.CompilerParams(
            dimension_semantics=("parallel",),
            vmem_limit_bytes=vmem_limit),
    )(xn_m)
    hndc_loss = jnp.sum(hndc_p) / n_da

    total_loss = (itc_loss
                  + cmr_loss * cmr_loss_weight
                  + imc_loss * imc_loss_weight
                  + hndc_loss * hndc_loss_weight)
    return total_loss, thresholds_new, itc_loss, cmr_loss, imc_loss, hndc_loss


if __name__ == "__main__":
    B, D = 8, 32
    key = jax.random.PRNGKey(0)
    k1, k2 = jax.random.split(key)

    image_features = jax.random.normal(k1, (B, D), jnp.float32)
    text_features = jax.random.normal(k2, (5 * B, D), jnp.float32)
    valid_caption_mask = jnp.ones((B, 4), jnp.float32)
    thresholds = jnp.zeros((B, 4), jnp.float32)
    logit_scale = jnp.float32(1.0 / 0.07)        # standard CLIP scale

    fn = jax.jit(clip_da_all_hn_far_loss)
    outs = jax.block_until_ready(
        fn(image_features, text_features, valid_caption_mask, logit_scale,
           thresholds))

    total, thr_new, itc, cmr, imc, hndc = outs
    assert thr_new.shape == (B, 4)
    for v in (total, itc, cmr, imc, hndc):
        assert bool(jnp.isfinite(v))
    print("KERNEL_OK")
</pallas_src>

<mosaic_0001>
module attributes {stable_mosaic.version = 11 : i64} {
  func.func @_fused_hndc_kernel(%arg0: i32, %arg1: memref<32x32xbf16, #tpu.memory_space<vmem>>, %arg2: memref<1x1x1xf32, #tpu.memory_space<vmem>>) attributes {dimension_semantics = [#tpu.dimension_semantics<parallel>], iteration_bounds = array<i64: 1>, scalar_prefetch = 0 : i64, scratch_operands = 0 : i64, tpu.core_type = #tpu.core_type<tc>, window_params = [{pipeline_mode = #tpu.pipeline_mode<synchronous>, transform_indices = @transform_0, window_bounds = array<i64: 32, 32>}, {transform_indices = @transform_1, window_bounds = array<i64: 1, 1, 1>}]} {
    %c32_i32 = arith.constant 32 : i32
    %0 = arith.muli %arg0, %c32_i32 : i32
    %1 = tpu.assume_multiple %0, 32 : i32
    %2 = arith.index_cast %1 : i32 to index
    %c0 = arith.constant 0 : index
    %3 = vector.load %arg1[%2, %c0] : memref<32x32xbf16, #tpu.memory_space<vmem>>, vector<32x32xbf16>
    %4 = arith.extf %3 : vector<32x32xbf16> to vector<32x32xf32>
    %cst = arith.constant 14.2857141 : f32
    %5 = vector.broadcast %cst : f32 to vector<32x32xf32>
    %6 = arith.mulf %4, %5 : vector<32x32xf32>
    %7 = arith.truncf %6 : vector<32x32xf32> to vector<32x32xbf16>
    %c0_0 = arith.constant 0 : index
    %c0_1 = arith.constant 0 : index
    %8 = vector.load %arg1[%c0_0, %c0_1] : memref<32x32xbf16, #tpu.memory_space<vmem>>, vector<32x32xbf16>
    %cst_2 = arith.constant dense<0.000000e+00> : vector<32x32xf32>
    %9 = tpu.matmul %7, %8, %cst_2 {dimension_numbers = #tpu.dot_dimension_numbers<[1], [1], [0], [0], [0, 0, 1, 0], [], []>} : vector<32x32xbf16>, vector<32x32xbf16>, vector<32x32xf32> -> vector<32x32xf32>
    %10 = tpu.iota {dimensions = array<i32: 0>} : vector<32x1xi32>
    %c32_i32_3 = arith.constant 32 : i32
    %11 = arith.muli %arg0, %c32_i32_3 : i32
    %12 = vector.broadcast %11 : i32 to vector<32x1xi32>
    %13 = arith.addi %10, %12 : vector<32x1xi32>
    %14 = tpu.iota {dimensions = array<i32: 1>} : vector<32x32xi32>
    %15 = vector.broadcast %13 : vector<32x1xi32> to vector<32x32xi32>
    %16 = arith.cmpi eq, %14, %15 : vector<32x32xi32>
    %cst_4 = arith.constant -1.000000e+30 : f32
    %17 = vector.broadcast %cst_4 : f32 to vector<32x32xf32>
    %18 = arith.select %16, %17, %9 : vector<32x32xi1>, vector<32x32xf32>
    %cst_5 = arith.constant dense<0xFF800000> : vector<32xf32>
    %19 = vector.multi_reduction <maximumf>, %18, %cst_5 [1] : vector<32x32xf32> to vector<32xf32>
    %20 = vector.shape_cast %19 : vector<32xf32> to vector<32x1xf32>
    %21 = vector.broadcast %20 : vector<32x1xf32> to vector<32x32xf32>
    %22 = arith.subf %18, %21 : vector<32x32xf32>
    %23 = math.exp %22 : vector<32x32xf32>
    %cst_6 = arith.constant dense<0.000000e+00> : vector<32xf32>
    %24 = vector.multi_reduction <add>, %23, %cst_6 [1] : vector<32x32xf32> to vector<32xf32>
    %25 = vector.shape_cast %24 : vector<32xf32> to vector<32x1xf32>
    %26 = math.log %25 : vector<32x1xf32>
    %27 = arith.addf %20, %26 : vector<32x1xf32>
    %c0_i32 = arith.constant 0 : i32
    %28 = vector.broadcast %c0_i32 : i32 to vector<32x1xi32>
    %29 = arith.cmpi eq, %13, %28 : vector<32x1xi32>
    %30 = vector.extract_strided_slice %9 {offsets = [0, 1], sizes = [32, 1], strides = [1, 1]} : vector<32x32xf32> to vector<32x1xf32>
    %31 = vector.extract_strided_slice %9 {offsets = [0, 0], sizes = [32, 1], strides = [1, 1]} : vector<32x32xf32> to vector<32x1xf32>
    %32 = arith.select %29, %30, %31 : vector<32x1xi1>, vector<32x1xf32>
    %33 = arith.subf %27, %32 : vector<32x1xf32>
    %34 = vector.shape_cast %33 : vector<32x1xf32> to vector<1x32x1xf32>
    %cst_7 = arith.constant dense<0.000000e+00> : vector<1xf32>
    %35 = vector.multi_reduction <add>, %34, %cst_7 [1, 2] : vector<1x32x1xf32> to vector<1xf32>
    %36 = vector.shape_cast %35 : vector<1xf32> to vector<1x1x1xf32>
    %37 = vector.extract %36[0, 0, 0] : f32 from vector<1x1x1xf32>
    %38 = vector.broadcast %37 : f32 to vector<1x1xf32>
    %39 = vector.shape_cast %38 : vector<1x1xf32> to vector<1x1x1xf32>
    %c0_8 = arith.constant 0 : index
    %c0_9 = arith.constant 0 : index
    %c0_10 = arith.constant 0 : index
    %40 = vector.load %arg2[%c0_8, %c0_9, %c0_10] : memref<1x1x1xf32, #tpu.memory_space<vmem>>, vector<1x1x1xf32>
    tpu.vector_store %arg2[%c0_8, %c0_9, %c0_10], %39 {strides = array<i32>} : memref<1x1x1xf32, #tpu.memory_space<vmem>>, vector<1x1x1xf32>,
    return
  }
  func.func @transform_0(%arg0: i32) -> (i32, i32) {
    %c0_i32 = arith.constant 0 : i32
    %c0_i32_0 = arith.constant 0 : i32
    %c0_i32_1 = arith.constant 0 : i32
    return %c0_i32, %c0_i32_0 : i32, i32
  }
  func.func @transform_1(%arg0: i32) -> (i32, i32, i32) {
    %c0_i32 = arith.constant 0 : i32
    %c0_i32_0 = arith.constant 0 : i32
    %c0_i32_1 = arith.constant 0 : i32
    return %arg0, %c0_i32, %c0_i32_0 : i32, i32, i32
  }
}

module attributes {stable_mosaic.version = 11 : i64} {
  func.func @_fused_itc_cmr_imc_kernel(%arg0: i32, %arg1: memref<1x1xf32, #tpu.memory_space<smem>>, %arg2: memref<8x32xbf16, #tpu.memory_space<vmem>>, %arg3: memref<8x128xbf16, #tpu.memory_space<vmem>>, %arg4: memref<8x4xf32, #tpu.memory_space<vmem>>, %arg5: memref<8x4xf32, #tpu.memory_space<vmem>>, %arg6: memref<8x32xbf16, #tpu.memory_space<vmem>>, %arg7: memref<32x32xbf16, #tpu.memory_space<vmem>>, %arg8: memref<1x1x1xf32, #tpu.memory_space<vmem>>, %arg9: memref<1x1x1xf32, #tpu.memory_space<vmem>>, %arg10: memref<1x1x1xf32, #tpu.memory_space<vmem>>, %arg11: memref<1x1x1xf32, #tpu.memory_space<vmem>>, %arg12: memref<1x1x4xf32, #tpu.memory_space<vmem>>, %arg13: memref<1x1x4xf32, #tpu.memory_space<vmem>>, %arg14: memref<1x1x8xf32, #tpu.memory_space<vmem>>, %arg15: memref<1x1x8xf32, #tpu.memory_space<vmem>>) attributes {dimension_semantics = [#tpu.dimension_semantics<parallel>], iteration_bounds = array<i64: 1>, scalar_prefetch = 0 : i64, scratch_operands = 0 : i64, tpu.core_type = #tpu.core_type<tc>, window_params = [{transform_indices = @transform_0, window_bounds = array<i64: 1, 1>}, {transform_indices = @transform_1, window_bounds = array<i64: 8, 32>}, {transform_indices = @transform_2, window_bounds = array<i64: 8, 128>}, {transform_indices = @transform_3, window_bounds = array<i64: 8, 4>}, {transform_indices = @transform_4, window_bounds = array<i64: 8, 4>}, {pipeline_mode = #tpu.pipeline_mode<synchronous>, transform_indices = @transform_5, window_bounds = array<i64: 8, 32>}, {pipeline_mode = #tpu.pipeline_mode<synchronous>, transform_indices = @transform_6, window_bounds = array<i64: 32, 32>}, {transform_indices = @transform_7, window_bounds = array<i64: 1, 1, 1>}, {transform_indices = @transform_8, window_bounds = array<i64: 1, 1, 1>}, {transform_indices = @transform_9, window_bounds = array<i64: 1, 1, 1>}, {transform_indices = @transform_10, window_bounds = array<i64: 1, 1, 1>}, {transform_indices = @transform_11, window_bounds = array<i64: 1, 1, 4>}, {transform_indices = @transform_12, window_bounds = array<i64: 1, 1, 4>}, {transform_indices = @transform_13, window_bounds = array<i64: 1, 1, 8>}, {transform_indices = @transform_14, window_bounds = array<i64: 1, 1, 8>}]} {
    %c0 = arith.constant 0 : index
    %c0_0 = arith.constant 0 : index
    %0 = memref.load %arg1[%c0, %c0_0] : memref<1x1xf32, #tpu.memory_space<smem>>
    %c0_1 = arith.constant 0 : index
    %c0_2 = arith.constant 0 : index
    %1 = vector.load %arg2[%c0_1, %c0_2] : memref<8x32xbf16, #tpu.memory_space<vmem>>, vector<8x32xbf16>
    %2 = arith.extf %1 : vector<8x32xbf16> to vector<8x32xf32>
    %3 = vector.broadcast %0 : f32 to vector<8x32xf32>
    %4 = arith.mulf %2, %3 : vector<8x32xf32>
    %5 = arith.truncf %4 : vector<8x32xf32> to vector<8x32xbf16>
    %c8_i32 = arith.constant 8 : i32
    %6 = arith.muli %arg0, %c8_i32 : i32
    %7 = tpu.assume_multiple %6, 8 : i32
    %8 = arith.index_cast %7 : i32 to index
    %c0_3 = arith.constant 0 : index
    %9 = vector.load %arg6[%8, %c0_3] : memref<8x32xbf16, #tpu.memory_space<vmem>>, vector<8x32xbf16>
    %10 = arith.extf %9 : vector<8x32xbf16> to vector<8x32xf32>
    %11 = arith.mulf %2, %10 : vector<8x32xf32>
    %cst = arith.constant dense<0.000000e+00> : vector<8xf32>
    %12 = vector.multi_reduction <add>, %11, %cst [1] : vector<8x32xf32> to vector<8xf32>
    %13 = vector.shape_cast %12 : vector<8xf32> to vector<8x1xf32>
    %14 = vector.broadcast %0 : f32 to vector<8x1xf32>
    %15 = arith.mulf %13, %14 : vector<8x1xf32>
    %c0_4 = arith.constant 0 : index
    %c0_5 = arith.constant 0 : index
    %16 = vector.load %arg6[%c0_4, %c0_5] : memref<8x32xbf16, #tpu.memory_space<vmem>>, vector<8x32xbf16>
    %cst_6 = arith.constant dense<0.000000e+00> : vector<8x8xf32>
    %17 = tpu.matmul %5, %16, %cst_6 {dimension_numbers = #tpu.dot_dimension_numbers<[1], [1], [0], [0], [0, 0, 1, 0], [], []>} : vector<8x32xbf16>, vector<8x32xbf16>, vector<8x8xf32> -> vector<8x8xf32>
    %c0_7 = arith.constant 0 : index
    %c0_8 = arith.constant 0 : index
    %18 = vector.load %arg7[%c0_7, %c0_8] : memref<32x32xbf16, #tpu.memory_space<vmem>>, vector<32x32xbf16>
    %cst_9 = arith.constant dense<0.000000e+00> : vector<8x32xf32>
    %19 = tpu.matmul %5, %18, %cst_9 {dimension_numbers = #tpu.dot_dimension_numbers<[1], [1], [0], [0], [0, 0, 1, 0], [], []>} : vector<8x32xbf16>, vector<32x32xbf16>, vector<8x32xf32> -> vector<8x32xf32>
    %cst_10 = arith.constant dense<0xFF800000> : vector<8xf32>
    %20 = vector.multi_reduction <maximumf>, %17, %cst_10 [1] : vector<8x8xf32> to vector<8xf32>
    %21 = vector.shape_cast %20 : vector<8xf32> to vector<8x1xf32>
    %cst_11 = arith.constant dense<0xFF800000> : vector<8xf32>
    %22 = vector.multi_reduction <maximumf>, %19, %cst_11 [1] : vector<8x32xf32> to vector<8xf32>
    %23 = vector.shape_cast %22 : vector<8xf32> to vector<8x1xf32>
    %24 = arith.maximumf %21, %23 : vector<8x1xf32>
    %25 = vector.broadcast %24 : vector<8x1xf32> to vector<8x8xf32>
    %26 = arith.subf %17, %25 : vector<8x8xf32>
    %27 = math.exp %26 : vector<8x8xf32>
    %cst_12 = arith.constant dense<0.000000e+00> : vector<8xf32>
    %28 = vector.multi_reduction <add>, %27, %cst_12 [1] : vector<8x8xf32> to vector<8xf32>
    %29 = vector.shape_cast %28 : vector<8xf32> to vector<8x1xf32>
    %30 = vector.broadcast %24 : vector<8x1xf32> to vector<8x32xf32>
    %31 = arith.subf %19, %30 : vector<8x32xf32>
    %32 = math.exp %31 : vector<8x32xf32>
    %cst_13 = arith.constant dense<0.000000e+00> : vector<8xf32>
    %33 = vector.multi_reduction <add>, %32, %cst_13 [1] : vector<8x32xf32> to vector<8xf32>
    %34 = vector.shape_cast %33 : vector<8xf32> to vector<8x1xf32>
    %35 = arith.addf %29, %34 : vector<8x1xf32>
    %36 = math.log %35 : vector<8x1xf32>
    %37 = arith.addf %24, %36 : vector<8x1xf32>
    %38 = arith.subf %37, %15 : vector<8x1xf32>
    %39 = vector.shape_cast %38 : vector<8x1xf32> to vector<1x8x1xf32>
    %cst_14 = arith.constant dense<0.000000e+00> : vector<1xf32>
    %40 = vector.multi_reduction <add>, %39, %cst_14 [1, 2] : vector<1x8x1xf32> to vector<1xf32>
    %41 = vector.shape_cast %40 : vector<1xf32> to vector<1x1x1xf32>
    %42 = vector.extract %41[0, 0, 0] : f32 from vector<1x1x1xf32>
    %43 = vector.broadcast %42 : f32 to vector<1x1xf32>
    %44 = vector.shape_cast %43 : vector<1x1xf32> to vector<1x1x1xf32>
    %c0_15 = arith.constant 0 : index
    %c0_16 = arith.constant 0 : index
    %c0_17 = arith.constant 0 : index
    %45 = vector.load %arg8[%c0_15, %c0_16, %c0_17] : memref<1x1x1xf32, #tpu.memory_space<vmem>>, vector<1x1x1xf32>
    tpu.vector_store %arg8[%c0_15, %c0_16, %c0_17], %44 {strides = array<i32>} : memref<1x1x1xf32, #tpu.memory_space<vmem>>, vector<1x1x1xf32>,
    %46 = vector.shape_cast %15 : vector<8x1xf32> to vector<1x8x1xf32>
    %cst_18 = arith.constant dense<0.000000e+00> : vector<1xf32>
    %47 = vector.multi_reduction <add>, %46, %cst_18 [1, 2] : vector<1x8x1xf32> to vector<1xf32>
    %48 = vector.shape_cast %47 : vector<1xf32> to vector<1x1x1xf32>
    %49 = vector.extract %48[0, 0, 0] : f32 from vector<1x1x1xf32>
    %50 = vector.broadcast %49 : f32 to vector<1x1xf32>
    %51 = vector.shape_cast %50 : vector<1x1xf32> to vector<1x1x1xf32>
    %c0_19 = arith.constant 0 : index
    %c0_20 = arith.constant 0 : index
    %c0_21 = arith.constant 0 : index
    %52 = vector.load %arg9[%c0_19, %c0_20, %c0_21] : memref<1x1x1xf32, #tpu.memory_space<vmem>>, vector<1x1x1xf32>
    tpu.vector_store %arg9[%c0_19, %c0_20, %c0_21], %51 {strides = array<i32>} : memref<1x1x1xf32, #tpu.memory_space<vmem>>, vector<1x1x1xf32>,
    %cst_22 = arith.constant dense<0xFF800000> : vector<8xf32>
    %53 = vector.multi_reduction <maximumf>, %17, %cst_22 [0] : vector<8x8xf32> to vector<8xf32>
    %54 = vector.shape_cast %53 : vector<8xf32> to vector<1x8xf32>
    %55 = vector.broadcast %54 : vector<1x8xf32> to vector<8x8xf32>
    %56 = arith.subf %17, %55 : vector<8x8xf32>
    %57 = math.exp %56 : vector<8x8xf32>
    %cst_23 = arith.constant dense<0.000000e+00> : vector<8xf32>
    %58 = vector.multi_reduction <add>, %57, %cst_23 [0] : vector<8x8xf32> to vector<8xf32>
    %59 = vector.shape_cast %58 : vector<8xf32> to vector<1x8xf32>
    %60 = vector.shape_cast %54 : vector<1x8xf32> to vector<1x1x8xf32>
    %c0_24 = arith.constant 0 : index
    %c0_25 = arith.constant 0 : index
    %c0_26 = arith.constant 0 : index
    %61 = vector.load %arg14[%c0_24, %c0_25, %c0_26] : memref<1x1x8xf32, #tpu.memory_space<vmem>>, vector<1x1x8xf32>
    tpu.vector_store %arg14[%c0_24, %c0_25, %c0_26], %60 {strides = array<i32>} : memref<1x1x8xf32, #tpu.memory_space<vmem>>, vector<1x1x8xf32>,
    %62 = vector.shape_cast %59 : vector<1x8xf32> to vector<1x1x8xf32>
    %c0_27 = arith.constant 0 : index
    %c0_28 = arith.constant 0 : index
    %c0_29 = arith.constant 0 : index
    %63 = vector.load %arg15[%c0_27, %c0_28, %c0_29] : memref<1x1x8xf32, #tpu.memory_space<vmem>>, vector<1x1x8xf32>
    tpu.vector_store %arg15[%c0_27, %c0_28, %c0_29], %62 {strides = array<i32>} : memref<1x1x8xf32, #tpu.memory_space<vmem>>, vector<1x1x8xf32>,
    %c0_30 = arith.constant 0 : index
    %c0_31 = arith.constant 0 : index
    %64 = vector.load %arg3[%c0_30, %c0_31] : memref<8x128xbf16, #tpu.memory_space<vmem>>, vector<8x128xbf16>
    %65 = arith.extf %64 : vector<8x128xbf16> to vector<8x128xf32>
    %66 = tpu.iota {dimensions = array<i32: 1>} : vector<8x4xi32>
    %cst_32 = arith.constant 0.000000e+00 : f32
    %67 = vector.broadcast %cst_32 : f32 to vector<8x4xf32>
    %68 = vector.extract_strided_slice %65 {offsets = [0, 0], sizes = [8, 32], strides = [1, 1]} : vector<8x128xf32> to vector<8x32xf32>
    %69 = arith.mulf %68, %2 : vector<8x32xf32>
    %cst_33 = arith.constant dense<0.000000e+00> : vector<8xf32>
    %70 = vector.multi_reduction <add>, %69, %cst_33 [1] : vector<8x32xf32> to vector<8xf32>
    %71 = vector.shape_cast %70 : vector<8xf32> to vector<8x1xf32>
    %c0_i32 = arith.constant 0 : i32
    %72 = vector.broadcast %c0_i32 : i32 to vector<8x4xi32>
    %73 = arith.cmpi eq, %66, %72 : vector<8x4xi32>
    %cst_34 = arith.constant 0.000000e+00 : f32
    %74 = vector.shape_cast %71 : vector<8x1xf32> to vector<8x1xf32>
    %75 = vector.broadcast %74 : vector<8x1xf32> to vector<8x4xf32>
    %76 = vector.broadcast %cst_34 : f32 to vector<8x4xf32>
    %77 = arith.select %73, %75, %76 : vector<8x4xi1>, vector<8x4xf32>
    %78 = arith.addf %67, %77 : vector<8x4xf32>
    %79 = vector.extract_strided_slice %65 {offsets = [0, 32], sizes = [8, 32], strides = [1, 1]} : vector<8x128xf32> to vector<8x32xf32>
    %80 = arith.mulf %79, %2 : vector<8x32xf32>
    %cst_35 = arith.constant dense<0.000000e+00> : vector<8xf32>
    %81 = vector.multi_reduction <add>, %80, %cst_35 [1] : vector<8x32xf32> to vector<8xf32>
    %82 = vector.shape_cast %81 : vector<8xf32> to vector<8x1xf32>
    %c1_i32 = arith.constant 1 : i32
    %83 = vector.broadcast %c1_i32 : i32 to vector<8x4xi32>
    %84 = arith.cmpi eq, %66, %83 : vector<8x4xi32>
    %cst_36 = arith.constant 0.000000e+00 : f32
    %85 = vector.shape_cast %82 : vector<8x1xf32> to vector<8x1xf32>
    %86 = vector.broadcast %85 : vector<8x1xf32> to vector<8x4xf32>
    %87 = vector.broadcast %cst_36 : f32 to vector<8x4xf32>
    %88 = arith.select %84, %86, %87 : vector<8x4xi1>, vector<8x4xf32>
    %89 = arith.addf %78, %88 : vector<8x4xf32>
    %90 = vector.extract_strided_slice %65 {offsets = [0, 64], sizes = [8, 32], strides = [1, 1]} : vector<8x128xf32> to vector<8x32xf32>
    %91 = arith.mulf %90, %2 : vector<8x32xf32>
    %cst_37 = arith.constant dense<0.000000e+00> : vector<8xf32>
    %92 = vector.multi_reduction <add>, %91, %cst_37 [1] : vector<8x32xf32> to vector<8xf32>
    %93 = vector.shape_cast %92 : vector<8xf32> to vector<8x1xf32>
    %c2_i32 = arith.constant 2 : i32
    %94 = vector.broadcast %c2_i32 : i32 to vector<8x4xi32>
    %95 = arith.cmpi eq, %66, %94 : vector<8x4xi32>
    %cst_38 = arith.constant 0.000000e+00 : f32
    %96 = vector.shape_cast %93 : vector<8x1xf32> to vector<8x1xf32>
    %97 = vector.broadcast %96 : vector<8x1xf32> to vector<8x4xf32>
    %98 = vector.broadcast %cst_38 : f32 to vector<8x4xf32>
    %99 = arith.select %95, %97, %98 : vector<8x4xi1>, vector<8x4xf32>
    %100 = arith.addf %89, %99 : vector<8x4xf32>
    %101 = vector.extract_strided_slice %65 {offsets = [0, 96], sizes = [8, 32], strides = [1, 1]} : vector<8x128xf32> to vector<8x32xf32>
    %102 = arith.mulf %101, %2 : vector<8x32xf32>
    %cst_39 = arith.constant dense<0.000000e+00> : vector<8xf32>
    %103 = vector.multi_reduction <add>, %102, %cst_39 [1] : vector<8x32xf32> to vector<8xf32>
    %104 = vector.shape_cast %103 : vector<8xf32> to vector<8x1xf32>
    %c3_i32 = arith.constant 3 : i32
    %105 = vector.broadcast %c3_i32 : i32 to vector<8x4xi32>
    %106 = arith.cmpi eq, %66, %105 : vector<8x4xi32>
    %cst_40 = arith.constant 0.000000e+00 : f32
    %107 = vector.shape_cast %104 : vector<8x1xf32> to vector<8x1xf32>
    %108 = vector.broadcast %107 : vector<8x1xf32> to vector<8x4xf32>
    %109 = vector.broadcast %cst_40 : f32 to vector<8x4xf32>
    %110 = arith.select %106, %108, %109 : vector<8x4xi1>, vector<8x4xf32>
    %111 = arith.addf %100, %110 : vector<8x4xf32>
    %112 = vector.broadcast %0 : f32 to vector<8x4xf32>
    %113 = arith.mulf %111, %112 : vector<8x4xf32>
    %c0_41 = arith.constant 0 : index
    %c0_42 = arith.constant 0 : index
    %114 = vector.load %arg4[%c0_41, %c0_42] : memref<8x4xf32, #tpu.memory_space<vmem>>, vector<8x4xf32>
    %115 = arith.mulf %113, %114 : vector<8x4xf32>
    %c0_43 = arith.constant 0 : index
    %c0_44 = arith.constant 0 : index
    %116 = vector.load %arg5[%c0_43, %c0_44] : memref<8x4xf32, #tpu.memory_space<vmem>>, vector<8x4xf32>
    %117 = arith.addf %116, %115 : vector<8x4xf32>
    %118 = vector.broadcast %15 : vector<8x1xf32> to vector<8x4xf32>
    %119 = arith.subf %117, %118 : vector<8x4xf32>
    %cst_45 = arith.constant 0.000000e+00 : f32
    %120 = vector.broadcast %cst_45 : f32 to vector<8x4xf32>
    %121 = arith.maximumf %119, %120 : vector<8x4xf32>
    %122 = arith.mulf %121, %114 : vector<8x4xf32>
    %123 = vector.shape_cast %122 : vector<8x4xf32> to vector<1x8x4xf32>
    %cst_46 = arith.constant dense<0.000000e+00> : vector<1xf32>
    %124 = vector.multi_reduction <add>, %123, %cst_46 [1, 2] : vector<1x8x4xf32> to vector<1xf32>
    %125 = vector.shape_cast %124 : vector<1xf32> to vector<1x1x1xf32>
    %126 = vector.extract %125[0, 0, 0] : f32 from vector<1x1x1xf32>
    %127 = vector.broadcast %126 : f32 to vector<1x1xf32>
    %128 = vector.shape_cast %127 : vector<1x1xf32> to vector<1x1x1xf32>
    %c0_47 = arith.constant 0 : index
    %c0_48 = arith.constant 0 : index
    %c0_49 = arith.constant 0 : index
    %129 = vector.load %arg10[%c0_47, %c0_48, %c0_49] : memref<1x1x1xf32, #tpu.memory_space<vmem>>, vector<1x1x1xf32>
    tpu.vector_store %arg10[%c0_47, %c0_48, %c0_49], %128 {strides = array<i32>} : memref<1x1x1xf32, #tpu.memory_space<vmem>>, vector<1x1x1xf32>,
    %cst_50 = arith.constant dense<0.000000e+00> : vector<4xf32>
    %130 = vector.multi_reduction <add>, %115, %cst_50 [0] : vector<8x4xf32> to vector<4xf32>
    %131 = vector.shape_cast %130 : vector<4xf32> to vector<1x4xf32>
    %132 = vector.shape_cast %131 : vector<1x4xf32> to vector<1x1x4xf32>
    %c0_51 = arith.constant 0 : index
    %c0_52 = arith.constant 0 : index
    %c0_53 = arith.constant 0 : index
    %133 = vector.load %arg12[%c0_51, %c0_52, %c0_53] : memref<1x1x4xf32, #tpu.memory_space<vmem>>, vector<1x1x4xf32>
    tpu.vector_store %arg12[%c0_51, %c0_52, %c0_53], %132 {strides = array<i32>} : memref<1x1x4xf32, #tpu.memory_space<vmem>>, vector<1x1x4xf32>,
    %cst_54 = arith.constant 0.000000e+00 : f32
    %134 = vector.broadcast %cst_54 : f32 to vector<8x4xf32>
    %135 = arith.cmpf one, %115, %134 : vector<8x4xf32>
    %136 = arith.extui %135 : vector<8x4xi1> to vector<8x4xi32>
    %137 = arith.sitofp %136 : vector<8x4xi32> to vector<8x4xf32>
    %cst_55 = arith.constant dense<0.000000e+00> : vector<4xf32>
    %138 = vector.multi_reduction <add>, %137, %cst_55 [0] : vector<8x4xf32> to vector<4xf32>
    %139 = vector.shape_cast %138 : vector<4xf32> to vector<1x4xf32>
    %140 = vector.shape_cast %139 : vector<1x4xf32> to vector<1x1x4xf32>
    %c0_56 = arith.constant 0 : index
    %c0_57 = arith.constant 0 : index
    %c0_58 = arith.constant 0 : index
    %141 = vector.load %arg13[%c0_56, %c0_57, %c0_58] : memref<1x1x4xf32, #tpu.memory_space<vmem>>, vector<1x1x4xf32>
    tpu.vector_store %arg13[%c0_56, %c0_57, %c0_58], %140 {strides = array<i32>} : memref<1x1x4xf32, #tpu.memory_space<vmem>>, vector<1x1x4xf32>,
    %142 = vector.broadcast %0 : f32 to vector<8x32xf32>
    %143 = arith.mulf %10, %142 : vector<8x32xf32>
    %144 = arith.truncf %143 : vector<8x32xf32> to vector<8x32xbf16>
    %c0_59 = arith.constant 0 : index
    %c0_60 = arith.constant 0 : index
    %145 = vector.load %arg7[%c0_59, %c0_60] : memref<32x32xbf16, #tpu.memory_space<vmem>>, vector<32x32xbf16>
    %cst_61 = arith.constant dense<0.000000e+00> : vector<8x32xf32>
    %146 = tpu.matmul %144, %145, %cst_61 {dimension_numbers = #tpu.dot_dimension_numbers<[1], [1], [0], [0], [0, 0, 1, 0], [], []>} : vector<8x32xbf16>, vector<32x32xbf16>, vector<8x32xf32> -> vector<8x32xf32>
    %cst_62 = arith.constant dense<0xFF800000> : vector<8xf32>
    %147 = vector.multi_reduction <maximumf>, %146, %cst_62 [1] : vector<8x32xf32> to vector<8xf32>
    %148 = vector.shape_cast %147 : vector<8xf32> to vector<8x1xf32>
    %149 = vector.broadcast %148 : vector<8x1xf32> to vector<8x32xf32>
    %150 = arith.subf %146, %149 : vector<8x32xf32>
    %151 = math.exp %150 : vector<8x32xf32>
    %cst_63 = arith.constant dense<0.000000e+00> : vector<8xf32>
    %152 = vector.multi_reduction <add>, %151, %cst_63 [1] : vector<8x32xf32> to vector<8xf32>
    %153 = vector.shape_cast %152 : vector<8xf32> to vector<8x1xf32>
    %154 = math.log %153 : vector<8x1xf32>
    %155 = arith.addf %148, %154 : vector<8x1xf32>
    %156 = vector.extract_strided_slice %146 {offsets = [0, 0], sizes = [8, 1], strides = [1, 1]} : vector<8x32xf32> to vector<8x1xf32>
    %157 = arith.subf %155, %156 : vector<8x1xf32>
    %158 = vector.shape_cast %157 : vector<8x1xf32> to vector<1x8x1xf32>
    %cst_64 = arith.constant dense<0.000000e+00> : vector<1xf32>
    %159 = vector.multi_reduction <add>, %158, %cst_64 [1, 2] : vector<1x8x1xf32> to vector<1xf32>
    %160 = vector.shape_cast %159 : vector<1xf32> to vector<1x1x1xf32>
    %161 = vector.extract %160[0, 0, 0] : f32 from vector<1x1x1xf32>
    %162 = vector.broadcast %161 : f32 to vector<1x1xf32>
    %163 = vector.shape_cast %162 : vector<1x1xf32> to vector<1x1x1xf32>
    %c0_65 = arith.constant 0 : index
    %c0_66 = arith.constant 0 : index
    %c0_67 = arith.constant 0 : index
    %164 = vector.load %arg11[%c0_65, %c0_66, %c0_67] : memref<1x1x1xf32, #tpu.memory_space<vmem>>, vector<1x1x1xf32>
    tpu.vector_store %arg11[%c0_65, %c0_66, %c0_67], %163 {strides = array<i32>} : memref<1x1x1xf32, #tpu.memory_space<vmem>>, vector<1x1x1xf32>,
    return
  }
  func.func @transform_0(%arg0: i32) -> (i32, i32) {
    %c0_i32 = arith.constant 0 : i32
    %c0_i32_0 = arith.constant 0 : i32
    %c0_i32_1 = arith.constant 0 : i32
    return %c0_i32, %c0_i32_0 : i32, i32
  }
  func.func @transform_1(%arg0: i32) -> (i32, i32) {
    %c0_i32 = arith.constant 0 : i32
    %c0_i32_0 = arith.constant 0 : i32
    return %arg0, %c0_i32 : i32, i32
  }
  func.func @transform_2(%arg0: i32) -> (i32, i32) {
    %c0_i32 = arith.constant 0 : i32
    %c0_i32_0 = arith.constant 0 : i32
    return %arg0, %c0_i32 : i32, i32
  }
  func.func @transform_3(%arg0: i32) -> (i32, i32) {
    %c0_i32 = arith.constant 0 : i32
    %c0_i32_0 = arith.constant 0 : i32
    return %arg0, %c0_i32 : i32, i32
  }
  func.func @transform_4(%arg0: i32) -> (i32, i32) {
    %c0_i32 = arith.constant 0 : i32
    %c0_i32_0 = arith.constant 0 : i32
    return %arg0, %c0_i32 : i32, i32
  }
  func.func @transform_5(%arg0: i32) -> (i32, i32) {
    %c0_i32 = arith.constant 0 : i32
    %c0_i32_0 = arith.constant 0 : i32
    %c0_i32_1 = arith.constant 0 : i32
    return %c0_i32, %c0_i32_0 : i32, i32
  }
  func.func @transform_6(%arg0: i32) -> (i32, i32) {
    %c0_i32 = arith.constant 0 : i32
    %c0_i32_0 = arith.constant 0 : i32
    %c0_i32_1 = arith.constant 0 : i32
    return %c0_i32, %c0_i32_0 : i32, i32
  }
  func.func @transform_7(%arg0: i32) -> (i32, i32, i32) {
    %c0_i32 = arith.constant 0 : i32
    %c0_i32_0 = arith.constant 0 : i32
    %c0_i32_1 = arith.constant 0 : i32
    return %arg0, %c0_i32, %c0_i32_0 : i32, i32, i32
  }
  func.func @transform_8(%arg0: i32) -> (i32, i32, i32) {
    %c0_i32 = arith.constant 0 : i32
    %c0_i32_0 = arith.constant 0 : i32
    %c0_i32_1 = arith.constant 0 : i32
    return %arg0, %c0_i32, %c0_i32_0 : i32, i32, i32
  }
  func.func @transform_9(%arg0: i32) -> (i32, i32, i32) {
    %c0_i32 = arith.constant 0 : i32
    %c0_i32_0 = arith.constant 0 : i32
    %c0_i32_1 = arith.constant 0 : i32
    return %arg0, %c0_i32, %c0_i32_0 : i32, i32, i32
  }
  func.func @transform_10(%arg0: i32) -> (i32, i32, i32) {
    %c0_i32 = arith.constant 0 : i32
    %c0_i32_0 = arith.constant 0 : i32
    %c0_i32_1 = arith.constant 0 : i32
    return %arg0, %c0_i32, %c0_i32_0 : i32, i32, i32
  }
  func.func @transform_11(%arg0: i32) -> (i32, i32, i32) {
    %c0_i32 = arith.constant 0 : i32
    %c0_i32_0 = arith.constant 0 : i32
    %c0_i32_1 = arith.constant 0 : i32
    return %arg0, %c0_i32, %c0_i32_0 : i32, i32, i32
  }
  func.func @transform_12(%arg0: i32) -> (i32, i32, i32) {
    %c0_i32 = arith.constant 0 : i32
    %c0_i32_0 = arith.constant 0 : i32
    %c0_i32_1 = arith.constant 0 : i32
    return %arg0, %c0_i32, %c0_i32_0 : i32, i32, i32
  }
  func.func @transform_13(%arg0: i32) -> (i32, i32, i32) {
    %c0_i32 = arith.constant 0 : i32
    %c0_i32_0 = arith.constant 0 : i32
    %c0_i32_1 = arith.constant 0 : i32
    return %arg0, %c0_i32, %c0_i32_0 : i32, i32, i32
  }
  func.func @transform_14(%arg0: i32) -> (i32, i32, i32) {
    %c0_i32 = arith.constant 0 : i32
    %c0_i32_0 = arith.constant 0 : i32
    %c0_i32_1 = arith.constant 0 : i32
    return %arg0, %c0_i32, %c0_i32_0 : i32, i32, i32
  }
}

</mosaic_0001>

<llo_original>
// kernel: clip_da_all_hn_far_loss.3
$region0: #{clip_da_all_hn_far_loss.3}
  #allocation0 [shape = 'u32[]', space=smem, size = 0x4, offset = 0x4, fixed_abs, tag = 'smem constant byte address 0x4 - core index']
  #allocation1 [shape = 'u32[72,128]{1,0:T(1,128)}', space=vmem, size = 0x9000, scoped, tag = 'internal scratch']
  %s0 = inlined_call_operand.vmem [shape: bf16[32,32], index: 0, kind: input, shape index: {}]
  %s1 = inlined_call_operand.hbm [shape: f32[1,1,1], index: 1, kind: output, shape index: {}]
  %s2 = sld [smem:[#allocation0]]
  $region14: #{clip_da_all_hn_far_loss.3} parent=0
    _
  %s4 = ssub.s32 1, %s2
  %s5 = scalar_select 0, %s4, %s2
  $region1: #{clip_da_all_hn_far_loss.3} parent=0
    #allocation2 [shape = 'u8[512]{0}', space=vmem, size = 0x400, scoped, tag = 'output window, operand 0, single buffered']
    #allocation3 [shape = 's32[1]{0}', space=sflag, size = 0x4, scoped, tag = 'scoped memory for clip_da_all_hn_far_loss.3']
    %6 = vsyncpa [#allocation3], 0
    // Predicated region
    $region2: #{clip_da_all_hn_far_loss.3} parent=1 // pred_check
      _
    $region3: #{clip_da_all_hn_far_loss.3} parent=1 // pred_check_branch
      %8 = sbr.rel (0) target = $region5
    $region4: #{clip_da_all_hn_far_loss.3} parent=1 // pred_region
      _
    $region5: #{clip_da_all_hn_far_loss.3} parent=1 // pred_fallthru
      _
    %s10 = smul.u32 0, 32
    %s11 = sshra.s32 %s10, 3
    %s12 = sand.u32 %s10, 7
    %s13 = smul.addr %s11, 4
    %s14 = scalar_lea.vmem %s0, %s13
    %v15 = vld [vmem:[%s14] sm:$0xf]
    %v16 = vld [vmem:[%s14 + $0x4] sm:$0xf]
    %v17 = vld [vmem:[%s14 + $0x8] sm:$0xf]
    %v18 = vld [vmem:[%s14 + $0xc] sm:$0xf]
    %v19 = vunpack.c.l.bf16 %v15
    %v20 = vunpack.c.l.bf16 %v16
    %v21 = vunpack.c.l.bf16 %v17
    %v22 = vunpack.c.l.bf16 %v18
    %v23 = vmul.f32 %v19, 14.285714
    %v24 = vmul.f32 %v20, 14.285714
    %v25 = vmul.f32 %v21, 14.285714
    %v26 = vmul.f32 %v22, 14.285714
    %v27 = vpack.c.bf16 %v24, %v23
    %v28 = vpack.c.bf16 %v26, %v25
    %v29 = vld [vmem:[%s0] sm:$0xf]
    %v30 = vld [vmem:[%s0 + $0x4] sm:$0xf]
    %v31 = vld [vmem:[%s0 + $0x8] sm:$0xf]
    %v32 = vld [vmem:[%s0 + $0xc] sm:$0xf]
    %v37 = vunpack.c.l.b16 %v29
    %v38 = vunpack.c.l.b16 %v30
    %v39 = vunpack.c.l.b16 %v31
    %v40 = vunpack.c.l.b16 %v32
    %v41 = vpack.c.b16 %v38, %v37
    %v42 = vpack.c.b16 %v40, %v39
    %vm43 = vcmask 261120
    %v45 = vsel %vm43, %v27, 0
    %v48 = vsel %vm43, %v28, 0
    %v51 = vsel %vm43, %v41, 0
    %v54 = vsel %vm43, %v42, 0
    %56 = vmatpush.bf16.xpose.msra.mxu0 0
    %57 = vmatpush.bf16.xpose.msra.mxu0 0
    %58 = vmatpush.bf16.xpose.msra.mxu0 0
    %59 = vmatpush.bf16.xpose.msra.mxu0 0
    %60 = vmatpush.bf16.xpose.msra.mxu0 0
    %61 = vmatpush.bf16.xpose.msra.mxu0 0
    %62 = vmatpush.bf16.xpose.msra.mxu0 %v54
    %63 = vmatpush.bf16.xpose.msra.mxu0 %v51
    %64 = vmatmul.bf16.gmra.mxu0 %v45
    %v65 = vpop.f32.mrf.mxu0
    %v66 = vadd.f32 0.0, %v65
    %v67 = vpop.f32.mrf.mxu0
    %v68 = vadd.f32 0.0, %v67
    %69 = vmatmul.bf16.gmra.mxu0 %v48
    %v70 = vpop.f32.mrf.mxu0
    %v71 = vadd.f32 0.0, %v70
    %v72 = vpop.f32.mrf.mxu0
    %v73 = vadd.f32 0.0, %v72
    %74 = vdwg.mxu0
    %v75 = vlaneseq
    %v76 = vshrl.u32 %v75, 7
    %v77 = vadd.s32 %v76, 8
    %v78 = vadd.s32 %v76, 16
    %v79 = vadd.s32 %v76, 24
    %v80 = vstv %s10
    %v81 = vadd.s32 %v76, %v80
    %v82 = vadd.s32 %v77, %v80
    %v83 = vadd.s32 %v78, %v80
    %v84 = vadd.s32 %v79, %v80
    %v85 = vlaneseq
    %v86 = vand.u32 %v85, 127
    %vm87 = vcmp.eq.s32.totalorder %v86, %v81
    %vm88 = vcmp.eq.s32.totalorder %v86, %v82
    %vm89 = vcmp.eq.s32.totalorder %v86, %v83
    %vm90 = vcmp.eq.s32.totalorder %v86, %v84
    %v91 = vsel %vm87, -1e+30, %v66
    %v92 = vsel %vm88, -1e+30, %v68
    %v93 = vsel %vm89, -1e+30, %v71
    %v94 = vsel %vm90, -1e+30, %v73
    %v95 = vsel %vm43, %v91, -inf
    %96 = vmax.xlane.f32.xlu0 %v95
    %v97 = vpop.xlane.xlu0 %96
    %v98 = vsel %vm43, %v92, -inf
    %99 = vmax.xlane.f32.xlu0 %v98
    %v100 = vpop.xlane.xlu0 %99
    %v101 = vsel %vm43, %v93, -inf
    %102 = vmax.xlane.f32.xlu0 %v101
    %v103 = vpop.xlane.xlu0 %102
    %v104 = vsel %vm43, %v94, -inf
    %105 = vmax.xlane.f32.xlu0 %v104
    %v106 = vpop.xlane.xlu0 %105
    %v107 = vsub.f32 %v91, %v97
    %v108 = vsub.f32 %v92, %v100
    %v109 = vsub.f32 %v93, %v103
    %v110 = vsub.f32 %v94, %v106
    %v111 = vmul.f32 %v107, 1.442695
    %v112 = vpow.pop %v111
    %v113 = vmul.f32 %v108, 1.442695
    %v114 = vpow.pop %v113
    %v115 = vmul.f32 %v109, 1.442695
    %v116 = vpow.pop %v115
    %v117 = vmul.f32 %v110, 1.442695
    %v118 = vpow.pop %v117
    %v119 = vsel %vm43, %v112, 0.0
    %120 = vadd.xlane.f32.xlu0 %v119
    %v121 = vpop.xlane.xlu0 %120
    %v122 = vsel %vm43, %v114, 0.0
    %123 = vadd.xlane.f32.xlu0 %v122
    %v124 = vpop.xlane.xlu0 %123
    %v125 = vsel %vm43, %v116, 0.0
    %126 = vadd.xlane.f32.xlu0 %v125
    %v127 = vpop.xlane.xlu0 %126
    %v128 = vsel %vm43, %v118, 0.0
    %129 = vadd.xlane.f32.xlu0 %v128
    %v130 = vpop.xlane.xlu0 %129
    %v131 = vlog2.pop %v121
    %v132 = vmul.f32 %v131, 0.6931472
    %v133 = vlog2.pop %v124
    %v134 = vmul.f32 %v133, 0.6931472
    %v135 = vlog2.pop %v127
    %v136 = vmul.f32 %v135, 0.6931472
    %v137 = vlog2.pop %v130
    %v138 = vmul.f32 %v137, 0.6931472
    %v139 = vadd.f32 %v97, %v132
    %v140 = vadd.f32 %v100, %v134
    %v141 = vadd.f32 %v103, %v136
    %v142 = vadd.f32 %v106, %v138
    %vm143 = vcmp.eq.s32.totalorder %v81, 0
    %vm144 = vcmp.eq.s32.totalorder %v82, 0
    %vm145 = vcmp.eq.s32.totalorder %v83, 0
    %vm146 = vcmp.eq.s32.totalorder %v84, 0
    %151 = vrot.lane.b32.xlu0 %v66, 1
    %v152 = vpop.permute.xlu0 %151
    %153 = vrot.lane.b32.xlu0 %v68, 1
    %v154 = vpop.permute.xlu0 %153
    %155 = vrot.lane.b32.xlu0 %v71, 1
    %v156 = vpop.permute.xlu0 %155
    %157 = vrot.lane.b32.xlu0 %v73, 1
    %v158 = vpop.permute.xlu0 %157
    %v163 = vsel %vm143, %v66, %v152
    %v164 = vsel %vm144, %v68, %v154
    %v165 = vsel %vm145, %v71, %v156
    %v166 = vsel %vm146, %v73, %v158
    %v167 = vsub.f32 %v139, %v163
    %v168 = vsub.f32 %v140, %v164
    %v169 = vsub.f32 %v141, %v165
    %v170 = vsub.f32 %v142, %v166
    %175 = vrot.lane.b32.xlu0 %v167, 127
    %v176 = vpop.permute.xlu0 %175
    %177 = vrot.lane.b32.xlu0 %v168, 127
    %v178 = vpop.permute.xlu0 %177
    %179 = vrot.lane.b32.xlu0 %v169, 127
    %v180 = vpop.permute.xlu0 %179
    %181 = vrot.lane.b32.xlu0 %v170, 127
    %v182 = vpop.permute.xlu0 %181
    %vm187 = vcmask 7168
    %v188 = vsel %vm187, %v176, 0.0
    %v189 = vsel %vm187, %v178, 0.0
    %v190 = vadd.f32 %v188, %v189
    %v191 = vsel %vm187, %v180, 0.0
    %v192 = vadd.f32 %v190, %v191
    %v193 = vsel %vm187, %v182, 0.0
    %v194 = vadd.f32 %v192, %v193
    %195 = vadd.xlane.f32.xlu0 %v194
    %v196 = vpop.xlane.xlu0 %195
    %v197 = vrot.slane %v196, 4
    %v198 = vadd.f32 %v196, %v197
    %v199 = vrot.slane %v198, 2
    %v200 = vadd.f32 %v198, %v199
    %v201 = vrot.slane %v200, 1
    %v202 = vadd.f32 %v200, %v201
    %s203 = vtos %v202
    %v204 = vstv %s203
    %vm205 = vcmask 0
    %206 = vst.msk [vmem:[#allocation2] sm:$0x1] %vm205, %v204
    // Predicated region
    $region6: #{clip_da_all_hn_far_loss.3} parent=1 // pred_check
      _
    $region7: #{clip_da_all_hn_far_loss.3} parent=1 // pred_check_branch
      %208 = sbr.rel (0) target = $region9
    $region8: #{clip_da_all_hn_far_loss.3} parent=1 // pred_region
      %210 = vsyncadd [#allocation3], 0
      %s212 = sshll.u32 [#allocation2], 4
      %s213 = int_to_ptr.vmem [resolvable:$true] %s212
      %s214 = sshll.u32 %s1, 4
      %s215 = int_to_ptr.hbm [resolvable:$true] %s214
      %217 = dma.vmem_to_hbm [thread:$0]  %s213, 16, %s215, [#allocation3]
    $region9: #{clip_da_all_hn_far_loss.3} parent=1 // pred_fallthru
      _
    // Predicated region
    $region10: #{clip_da_all_hn_far_loss.3} parent=1 // pred_check
      _
    $region11: #{clip_da_all_hn_far_loss.3} parent=1 // pred_check_branch
      %219 = sbr.rel (0) target = $region13
    $region12: #{clip_da_all_hn_far_loss.3} parent=1 // pred_region
      %221 = dma.done [#allocation3], 16
    $region13: #{clip_da_all_hn_far_loss.3} parent=1 // pred_fallthru
      _
    %222 = vsyncpa [#allocation3], 1

// kernel: clip_da_all_hn_far_loss.2
$region0: #{clip_da_all_hn_far_loss.2}
  #allocation0 [shape = 'u32[]', space=smem, size = 0x4, offset = 0x4, fixed_abs, tag = 'smem constant byte address 0x4 - core index']
  #allocation1 [shape = 'u32[72,128]{1,0:T(1,128)}', space=vmem, size = 0x9000, scoped, tag = 'internal scratch']
  #allocation2 [shape = 'f32[1,1]{1,0:T(1,128)S(6)}', space=smem, size = 0x200, scoped, tag = 'scoped memory for clip_da_all_hn_far_loss.2']
  %s0 = inlined_call_operand.<no memory space> [shape: f32[1,1], index: 0, kind: input, shape index: {}]
  %s1 = inlined_call_operand.vmem [shape: bf16[8,32], index: 1, kind: input, shape index: {}]
  %s2 = inlined_call_operand.vmem [shape: bf16[8,128], index: 2, kind: input, shape index: {}]
  %s3 = inlined_call_operand.vmem [shape: f32[8,4], index: 3, kind: input, shape index: {}]
  %s4 = inlined_call_operand.vmem [shape: f32[8,4], index: 4, kind: input, shape index: {}]
  %s5 = inlined_call_operand.vmem [shape: bf16[8,32], index: 5, kind: input, shape index: {}]
  %s6 = inlined_call_operand.vmem [shape: bf16[32,32], index: 6, kind: input, shape index: {}]
  %s7 = inlined_call_operand.hbm [shape: f32[1,1,1], index: 7, kind: output, shape index: {0}]
  %s8 = inlined_call_operand.hbm [shape: f32[1,1,1], index: 8, kind: output, shape index: {1}]
  %s9 = inlined_call_operand.hbm [shape: f32[1,1,1], index: 9, kind: output, shape index: {2}]
  %s10 = inlined_call_operand.hbm [shape: f32[1,1,1], index: 10, kind: output, shape index: {3}]
  %s11 = inlined_call_operand.vmem [shape: f32[1,1,4], index: 11, kind: output, shape index: {4}]
  %s12 = inlined_call_operand.vmem [shape: f32[1,1,4], index: 12, kind: output, shape index: {5}]
  %s13 = inlined_call_operand.vmem [shape: f32[1,1,8], index: 13, kind: output, shape index: {6}]
  %s14 = inlined_call_operand.vmem [shape: f32[1,1,8], index: 14, kind: output, shape index: {7}]
  %15 = xla_tuple %s7, %s8, %s9, %s10, %s11, %s12, %s13, %s14
  %s16 = sld [smem:[#allocation0]]
  $region94: #{clip_da_all_hn_far_loss.2} parent=0
    _
  %s18 = ssub.s32 1, %s16
  %s19 = scalar_select 0, %s18, %s16
  %20 = sst [smem:[#allocation2]] %s0
  $region1: #{clip_da_all_hn_far_loss.2} parent=0
    #allocation3 [shape = 'u8[512]{0}', space=vmem, size = 0x400, scoped, tag = 'output window, operand 0, single buffered']
    #allocation4 [shape = 's32[1]{0}', space=sflag, size = 0x4, scoped, tag = 'scoped memory for clip_da_all_hn_far_loss.2']
    #allocation5 [shape = 'u8[512]{0}', space=vmem, size = 0x400, scoped, tag = 'output window, operand 1, single buffered']
    #allocation6 [shape = 's32[1]{0}', space=sflag, size = 0x4, scoped, tag = 'scoped memory for clip_da_all_hn_far_loss.2']
    #allocation7 [shape = 'u8[512]{0}', space=vmem, size = 0x400, scoped, tag = 'output window, operand 2, single buffered']
    #allocation8 [shape = 'u8[512]{0}', space=vmem, size = 0x400, scoped, tag = 'output window, operand 3, single buffered']
    #allocation9 [shape = 's32[1]{0}', space=sflag, size = 0x4, scoped, tag = 'scoped memory for clip_da_all_hn_far_loss.2']
    %21 = vsyncpa [#allocation4], 0
    %22 = vsyncpa [#allocation6], 0
    %23 = vsyncpa [#allocation9], 0
    // Predicated region
    $region2: #{clip_da_all_hn_far_loss.2} parent=1 // pred_check
      _
    $region3: #{clip_da_all_hn_far_loss.2} parent=1 // pred_check_branch
      %25 = sbr.rel (0) target = $region5
    $region4: #{clip_da_all_hn_far_loss.2} parent=1 // pred_region
      _
    $region5: #{clip_da_all_hn_far_loss.2} parent=1 // pred_fallthru
      _
    // Predicated region
    $region6: #{clip_da_all_hn_far_loss.2} parent=1 // pred_check
      _
    $region7: #{clip_da_all_hn_far_loss.2} parent=1 // pred_check_branch
      %27 = sbr.rel (0) target = $region9
    $region8: #{clip_da_all_hn_far_loss.2} parent=1 // pred_region
      _
    $region9: #{clip_da_all_hn_far_loss.2} parent=1 // pred_fallthru
      _
    // Predicated region
    $region10: #{clip_da_all_hn_far_loss.2} parent=1 // pred_check
      _
    $region11: #{clip_da_all_hn_far_loss.2} parent=1 // pred_check_branch
      %29 = sbr.rel (0) target = $region13
    $region12: #{clip_da_all_hn_far_loss.2} parent=1 // pred_region
      _
    $region13: #{clip_da_all_hn_far_loss.2} parent=1 // pred_fallthru
      _
    // Predicated region
    $region14: #{clip_da_all_hn_far_loss.2} parent=1 // pred_check
      _
    $region15: #{clip_da_all_hn_far_loss.2} parent=1 // pred_check_branch
      %31 = sbr.rel (0) target = $region17
    $region16: #{clip_da_all_hn_far_loss.2} parent=1 // pred_region
      _
    $region17: #{clip_da_all_hn_far_loss.2} parent=1 // pred_fallthru
      _
    // Predicated region
    $region18: #{clip_da_all_hn_far_loss.2} parent=1 // pred_check
      _
    $region19: #{clip_da_all_hn_far_loss.2} parent=1 // pred_check_branch
      %33 = sbr.rel (0) target = $region21
    $region20: #{clip_da_all_hn_far_loss.2} parent=1 // pred_region
      _
    $region21: #{clip_da_all_hn_far_loss.2} parent=1 // pred_fallthru
      _
    // Predicated region
    $region22: #{clip_da_all_hn_far_loss.2} parent=1 // pred_check
      _
    $region23: #{clip_da_all_hn_far_loss.2} parent=1 // pred_check_branch
      %35 = sbr.rel (0) target = $region25
    $region24: #{clip_da_all_hn_far_loss.2} parent=1 // pred_region
      _
    $region25: #{clip_da_all_hn_far_loss.2} parent=1 // pred_fallthru
      _
    // Predicated region
    $region26: #{clip_da_all_hn_far_loss.2} parent=1 // pred_check
      _
    $region27: #{clip_da_all_hn_far_loss.2} parent=1 // pred_check_branch
      %37 = sbr.rel (0) target = $region29
    $region28: #{clip_da_all_hn_far_loss.2} parent=1 // pred_region
      _
    $region29: #{clip_da_all_hn_far_loss.2} parent=1 // pred_fallthru
      _
    %s39 = sld [smem:[#allocation2]]
    %v40 = vld [vmem:[%s1] sm:$0xf]
    %v41 = vunpack.c.l.bf16 %v40
    %v42 = vstv %s39
    %v43 = vmul.f32 %v41, %v42
    %v44 = vpack.c.bf16 %v43, %v43
    %s45 = smul.u32 0, 8
    %s46 = sshra.s32 %s45, 3
    %s47 = sand.u32 %s45, 7
    %s48 = smul.addr %s46, 4
    %s49 = scalar_lea.vmem %s5, %s48
    %v50 = vld [vmem:[%s49] sm:$0xf]
    %v51 = vunpack.c.l.bf16 %v50
    %v52 = vmul.f32 %v41, %v51
    %vm53 = vcmask 261120
    %v54 = vsel %vm53, %v52, 0.0
    %55 = vadd.xlane.f32.xlu0 %v54
    %v56 = vpop.xlane.xlu0 %55
    %v57 = vmul.f32 %v56, %v42
    %v58 = vld [vmem:[%s5] sm:$0xf]
    %v60 = vsel %vm53, %v44, 0
    %v63 = vsel %vm53, %v58, 0
    %65 = vmatpush.bf16.xpose.msra.mxu0 0
    %66 = vmatpush.bf16.xpose.msra.mxu0 0
    %67 = vmatpush.bf16.xpose.msra.mxu0 0
    %68 = vmatpush.bf16.xpose.msra.mxu0 0
    %69 = vmatpush.bf16.xpose.msra.mxu0 0
    %70 = vmatpush.bf16.xpose.msra.mxu0 0
    %71 = vmatpush.bf16.xpose.msra.mxu0 0
    %72 = vmatpush.bf16.xpose.msra.mxu0 %v63
    %73 = vmatmul.bf16.gmra.mxu0 %v60
    %v74 = vpop.f32.mrf.mxu0
    %v75 = vadd.f32 0.0, %v74
    %v76 = vpop.f32.mrf.mxu0
    %77 = vdwg.mxu0
    %v78 = vld [vmem:[%s6] sm:$0xf]
    %v79 = vld [vmem:[%s6 + $0x4] sm:$0xf]
    %v80 = vld [vmem:[%s6 + $0x8] sm:$0xf]
    %v81 = vld [vmem:[%s6 + $0xc] sm:$0xf]
    %v86 = vunpack.c.l.b16 %v78
    %v87 = vunpack.c.l.b16 %v79
    %v88 = vunpack.c.l.b16 %v80
    %v89 = vunpack.c.l.b16 %v81
    %v90 = vpack.c.b16 %v87, %v86
    %v91 = vpack.c.b16 %v89, %v88
    %v93 = vsel %vm53, %v90, 0
    %v96 = vsel %vm53, %v91, 0
    %98 = vmatpush.bf16.xpose.msra.mxu0 0
    %99 = vmatpush.bf16.xpose.msra.mxu0 0
    %100 = vmatpush.bf16.xpose.msra.mxu0 0
    %101 = vmatpush.bf16.xpose.msra.mxu0 0
    %102 = vmatpush.bf16.xpose.msra.mxu0 0
    %103 = vmatpush.bf16.xpose.msra.mxu0 0
    %104 = vmatpush.bf16.xpose.msra.mxu0 %v96
    %105 = vmatpush.bf16.xpose.msra.mxu0 %v93
    %106 = vmatmul.bf16.gmra.mxu0 %v60
    %v107 = vpop.f32.mrf.mxu0
    %v108 = vadd.f32 0.0, %v107
    %v109 = vpop.f32.mrf.mxu0
    %110 = vdwg.mxu0
    %vm111 = vcmask 64512
    %v112 = vsel %vm111, %v75, -inf
    %113 = vmax.xlane.f32.xlu0 %v112
    %v114 = vpop.xlane.xlu0 %113
    %v115 = vsel %vm53, %v108, -inf
    %116 = vmax.xlane.f32.xlu0 %v115
    %v117 = vpop.xlane.xlu0 %116
    %v118 = vmax.f32 %v114, %v117
    %v119 = vsub.f32 %v75, %v118
    %v120 = vmul.f32 %v119, 1.442695
    %v121 = vpow.pop %v120
    %v122 = vsel %vm111, %v121, 0.0
    %123 = vadd.xlane.f32.xlu0 %v122
    %v124 = vpop.xlane.xlu0 %123
    %v125 = vsub.f32 %v108, %v118
    %v126 = vmul.f32 %v125, 1.442695
    %v127 = vpow.pop %v126
    %v128 = vsel %vm53, %v127, 0.0
    %129 = vadd.xlane.f32.xlu0 %v128
    %v130 = vpop.xlane.xlu0 %129
    %v131 = vadd.f32 %v124, %v130
    %v132 = vlog2.pop %v131
    %v133 = vmul.f32 %v132, 0.6931472
    %v134 = vadd.f32 %v118, %v133
    %v135 = vsub.f32 %v134, %v57
    %vm136 = vcmask 7168
    %v137 = vsel %vm136, %v135, 0.0
    %138 = vadd.xlane.f32.xlu0 %v137
    %v139 = vpop.xlane.xlu0 %138
    %v140 = vrot.slane %v139, 4
    %v141 = vadd.f32 %v139, %v140
    %v142 = vrot.slane %v141, 2
    %v143 = vadd.f32 %v141, %v142
    %v144 = vrot.slane %v143, 1
    %v145 = vadd.f32 %v143, %v144
    %s146 = vtos %v145
    %v147 = vstv %s146
    %vm148 = vcmask 0
    %149 = vst.msk [vmem:[#allocation3] sm:$0x1] %vm148, %v147
    %v150 = vsel %vm136, %v57, 0.0
    %151 = vadd.xlane.f32.xlu0 %v150
    %v152 = vpop.xlane.xlu0 %151
    %v153 = vrot.slane %v152, 4
    %v154 = vadd.f32 %v152, %v153
    %v155 = vrot.slane %v154, 2
    %v156 = vadd.f32 %v154, %v155
    %v157 = vrot.slane %v156, 1
    %v158 = vadd.f32 %v156, %v157
    %s159 = vtos %v158
    %v160 = vstv %s159
    %161 = vst.msk [vmem:[#allocation5] sm:$0x1] %vm148, %v160
    %v162 = vrot.slane %v112, 4
    %v163 = vmax.f32 %v112, %v162
    %v164 = vrot.slane %v163, 2
    %v165 = vmax.f32 %v163, %v164
    %v166 = vrot.slane %v165, 1
    %v167 = vmax.f32 %v165, %v166
    %v168 = vsub.f32 %v75, %v167
    %v169 = vmul.f32 %v168, 1.442695
    %v170 = vpow.pop %v169
    %v171 = vsel %vm111, %v170, 0.0
    %v172 = vrot.slane %v171, 4
    %v173 = vadd.f32 %v171, %v172
    %v174 = vrot.slane %v173, 2
    %v175 = vadd.f32 %v173, %v174
    %v176 = vrot.slane %v175, 1
    %v177 = vadd.f32 %v175, %v176
    %vm178 = vcmask 57344
    %179 = vst.msk [vmem:[%s13] sm:$0x1] %vm178, %v167
    %180 = vst.msk [vmem:[%s14] sm:$0x1] %vm178, %v177
    %v181 = vld [vmem:[%s2] sm:$0xf]
    %v182 = vunpack.c.l.bf16 %v181
    %v183 = vlaneseq
    %v184 = vand.u32 %v183, 127
    %v185 = vmul.f32 %v182, %v41
    %v186 = vsel %vm53, %v185, 0.0
    %187 = vadd.xlane.f32.xlu0 %v186
    %v188 = vpop.xlane.xlu0 %187
    %vm189 = vcmp.eq.s32.totalorder %v184, 0
    %v190 = vsel %vm189, %v188, 0.0
    %v191 = vadd.f32 %v190, 0.0
    %193 = vrot.lane.b32.xlu0 %v41, 32
    %v194 = vpop.permute.xlu0 %193
    %v196 = vmul.f32 %v182, %v194
    %198 = vrot.lane.b32.xlu0 %v196, 96
    %v199 = vpop.permute.xlu0 %198
    %v201 = vsel %vm53, %v199, 0.0
    %202 = vadd.xlane.f32.xlu0 %v201
    %v203 = vpop.xlane.xlu0 %202
    %vm204 = vcmp.eq.s32.totalorder %v184, 1
    %v205 = vsel %vm204, %v203, 0.0
    %v206 = vadd.f32 %v191, %v205
    %207 = vrot.lane.b32.xlu0 %v41, 64
    %v208 = vpop.permute.xlu0 %207
    %v210 = vmul.f32 %v182, %v208
    %212 = vrot.lane.b32.xlu0 %v210, 64
    %v213 = vpop.permute.xlu0 %212
    %v215 = vsel %vm53, %v213, 0.0
    %216 = vadd.xlane.f32.xlu0 %v215
    %v217 = vpop.xlane.xlu0 %216
    %vm218 = vcmp.eq.s32.totalorder %v184, 2
    %v219 = vsel %vm218, %v217, 0.0
    %v220 = vadd.f32 %v206, %v219
    %221 = vrot.lane.b32.xlu0 %v41, 96
    %v222 = vpop.permute.xlu0 %221
    %v224 = vmul.f32 %v182, %v222
    %226 = vrot.lane.b32.xlu0 %v224, 32
    %v227 = vpop.permute.xlu0 %226
    %v229 = vsel %vm53, %v227, 0.0
    %230 = vadd.xlane.f32.xlu0 %v229
    %v231 = vpop.xlane.xlu0 %230
    %vm232 = vcmp.eq.s32.totalorder %v184, 3
    %v233 = vsel %vm232, %v231, 0.0
    %v234 = vadd.f32 %v220, %v233
    %v235 = vmul.f32 %v234, %v42
    %v236 = vld [vmem:[%s3] sm:$0xff]
    %v237 = vmul.f32 %v235, %v236
    %v238 = vld [vmem:[%s4] sm:$0xff]
    %v239 = vadd.f32 %v238, %v237
    %v240 = vsub.f32 %v239, %v57
    %v241 = vmax.f32 %v240, 0.0
    %v242 = vmul.f32 %v241, %v236
    %vm243 = vcmask 31744
    %v244 = vsel %vm243, %v242, 0.0
    %245 = vadd.xlane.f32.xlu0 %v244
    %v246 = vpop.xlane.xlu0 %245
    %v247 = vrot.slane %v246, 4
    %v248 = vadd.f32 %v246, %v247
    %v249 = vrot.slane %v248, 2
    %v250 = vadd.f32 %v248, %v249
    %v251 = vrot.slane %v250, 1
    %v252 = vadd.f32 %v250, %v251
    %s253 = vtos %v252
    %v254 = vstv %s253
    %255 = vst.msk [vmem:[#allocation7] sm:$0x1] %vm148, %v254
    %v256 = vsel %vm243, %v237, 0.0
    %v257 = vrot.slane %v256, 4
    %v258 = vadd.f32 %v256, %v257
    %v259 = vrot.slane %v258, 2
    %v260 = vadd.f32 %v258, %v259
    %v261 = vrot.slane %v260, 1
    %v262 = vadd.f32 %v260, %v261
    %vm263 = vcmask 24576
    %264 = vst.msk [vmem:[%s11] sm:$0x1] %vm263, %v262
    %vm265 = vcmp.ne.f32.partialorder %v237, 0.0
    %v266 = vsel %vm265, 1, 0
    %v267 = vcvt.s32.f32 %v266
    %v268 = vsel %vm243, %v267, 0.0
    %v269 = vrot.slane %v268, 4
    %v270 = vadd.f32 %v268, %v269
    %v271 = vrot.slane %v270, 2
    %v272 = vadd.f32 %v270, %v271
    %v273 = vrot.slane %v272, 1
    %v274 = vadd.f32 %v272, %v273
    %275 = vst.msk [vmem:[%s12] sm:$0x1] %vm263, %v274
    %v276 = vmul.f32 %v51, %v42
    %v277 = vpack.c.bf16 %v276, %v276
    %v278 = vld [vmem:[%s6] sm:$0xf]
    %v279 = vld [vmem:[%s6 + $0x4] sm:$0xf]
    %v280 = vld [vmem:[%s6 + $0x8] sm:$0xf]
    %v281 = vld [vmem:[%s6 + $0xc] sm:$0xf]
    %v286 = vunpack.c.l.b16 %v278
    %v287 = vunpack.c.l.b16 %v279
    %v288 = vunpack.c.l.b16 %v280
    %v289 = vunpack.c.l.b16 %v281
    %v290 = vpack.c.b16 %v287, %v286
    %v291 = vpack.c.b16 %v289, %v288
    %v293 = vsel %vm53, %v277, 0
    %v296 = vsel %vm53, %v290, 0
    %v299 = vsel %vm53, %v291, 0
    %301 = vmatpush.bf16.xpose.msra.mxu0 0
    %302 = vmatpush.bf16.xpose.msra.mxu0 0
    %303 = vmatpush.bf16.xpose.msra.mxu0 0
    %304 = vmatpush.bf16.xpose.msra.mxu0 0
    %305 = vmatpush.bf16.xpose.msra.mxu0 0
    %306 = vmatpush.bf16.xpose.msra.mxu0 0
    %307 = vmatpush.bf16.xpose.msra.mxu0 %v299
    %308 = vmatpush.bf16.xpose.msra.mxu0 %v296
    %309 = vmatmul.bf16.gmra.mxu0 %v293
    %v310 = vpop.f32.mrf.mxu0
    %v311 = vadd.f32 0.0, %v310
    %v312 = vpop.f32.mrf.mxu0
    %313 = vdwg.mxu0
    %v314 = vsel %vm53, %v311, -inf
    %315 = vmax.xlane.f32.xlu0 %v314
    %v316 = vpop.xlane.xlu0 %315
    %v317 = vsub.f32 %v311, %v316
    %v318 = vmul.f32 %v317, 1.442695
    %v319 = vpow.pop %v318
    %v320 = vsel %vm53, %v319, 0.0
    %321 = vadd.xlane.f32.xlu0 %v320
    %v322 = vpop.xlane.xlu0 %321
    %v323 = vlog2.pop %v322
    %v324 = vmul.f32 %v323, 0.6931472
    %v325 = vadd.f32 %v316, %v324
    %v326 = vsub.f32 %v325, %v311
    %v327 = vsel %vm136, %v326, 0.0
    %328 = vadd.xlane.f32.xlu0 %v327
    %v329 = vpop.xlane.xlu0 %328
    %v330 = vrot.slane %v329, 4
    %v331 = vadd.f32 %v329, %v330
    %v332 = vrot.slane %v331, 2
    %v333 = vadd.f32 %v331, %v332
    %v334 = vrot.slane %v333, 1
    %v335 = vadd.f32 %v333, %v334
    %s336 = vtos %v335
    %v337 = vstv %s336
    %338 = vst.msk [vmem:[#allocation8] sm:$0x1] %vm148, %v337
    // Predicated region
    $region30: #{clip_da_all_hn_far_loss.2} parent=1 // pred_check
      _
    $region31: #{clip_da_all_hn_far_loss.2} parent=1 // pred_check_branch
      %340 = sbr.rel (0) target = $region33
    $region32: #{clip_da_all_hn_far_loss.2} parent=1 // pred_region
      %342 = vsyncadd [#allocation4], 0
      %s344 = sshll.u32 [#allocation3], 4
      %s345 = int_to_ptr.vmem [resolvable:$true] %s344
      %s346 = sshll.u32 %s7, 4
      %s347 = int_to_ptr.hbm [resolvable:$true] %s346
      %349 = dma.vmem_to_hbm [thread:$0]  %s345, 16, %s347, [#allocation4]
    $region33: #{clip_da_all_hn_far_loss.2} parent=1 // pred_fallthru
      _
    // Predicated region
    $region34: #{clip_da_all_hn_far_loss.2} parent=1 // pred_check
      _
    $region35: #{clip_da_all_hn_far_loss.2} parent=1 // pred_check_branch
      %351 = sbr.rel (0) target = $region37
    $region36: #{clip_da_all_hn_far_loss.2} parent=1 // pred_region
      %353 = vsyncadd [#allocation6], 0
      %s355 = sshll.u32 [#allocation5], 4
      %s356 = int_to_ptr.vmem [resolvable:$true] %s355
      %s357 = sshll.u32 %s8, 4
      %s358 = int_to_ptr.hbm [resolvable:$true] %s357
      %360 = dma.vmem_to_hbm [thread:$0]  %s356, 16, %s358, [#allocation6]
    $region37: #{clip_da_all_hn_far_loss.2} parent=1 // pred_fallthru
      _
    // Predicated region
    $region38: #{clip_da_all_hn_far_loss.2} parent=1 // pred_check
      _
    $region39: #{clip_da_all_hn_far_loss.2} parent=1 // pred_check_branch
      %362 = sbr.rel (0) target = $region41
    $region40: #{clip_da_all_hn_far_loss.2} parent=1 // pred_region
      %364 = vsyncadd [#allocation6], 0
      %s366 = sshll.u32 [#allocation7], 4
      %s367 = int_to_ptr.vmem [resolvable:$true] %s366
      %s368 = sshll.u32 %s9, 4
      %s369 = int_to_ptr.hbm [resolvable:$true] %s368
      %371 = dma.vmem_to_hbm [thread:$0]  %s367, 16, %s369, [#allocation6]
    $region41: #{clip_da_all_hn_far_loss.2} parent=1 // pred_fallthru
      _
    // Predicated region
    $region42: #{clip_da_all_hn_far_loss.2} parent=1 // pred_check
      _
    $region43: #{clip_da_all_hn_far_loss.2} parent=1 // pred_check_branch
      %373 = sbr.rel (0) target = $region45
    $region44: #{clip_da_all_hn_far_loss.2} parent=1 // pred_region
      %375 = vsyncadd [#allocation9], 0
      %s377 = sshll.u32 [#allocation8], 4
      %s378 = int_to_ptr.vmem [resolvable:$true] %s377
      %s379 = sshll.u32 %s10, 4
      %s380 = int_to_ptr.hbm [resolvable:$true] %s379
      %382 = dma.vmem_to_hbm [thread:$0]  %s378, 16, %s380, [#allocation9]
    $region45: #{clip_da_all_hn_far_loss.2} parent=1 // pred_fallthru
      _
    // Predicated region
    $region46: #{clip_da_all_hn_far_loss.2} parent=1 // pred_check
      _
    $region47: #{clip_da_all_hn_far_loss.2} parent=1 // pred_check_branch
      %384 = sbr.rel (0) target = $region49
    $region48: #{clip_da_all_hn_far_loss.2} parent=1 // pred_region
      _
    $region49: #{clip_da_all_hn_far_loss.2} parent=1 // pred_fallthru
      _
    // Predicated region
    $region50: #{clip_da_all_hn_far_loss.2} parent=1 // pred_check
      _
    $region51: #{clip_da_all_hn_far_loss.2} parent=1 // pred_check_branch
      %386 = sbr.rel (0) target = $region53
    $region52: #{clip_da_all_hn_far_loss.2} parent=1 // pred_region
      _
    $region53: #{clip_da_all_hn_far_loss.2} parent=1 // pred_fallthru
      _
    // Predicated region
    $region54: #{clip_da_all_hn_far_loss.2} parent=1 // pred_check
      _
    $region55: #{clip_da_all_hn_far_loss.2} parent=1 // pred_check_branch
      %388 = sbr.rel (0) target = $region57
    $region56: #{clip_da_all_hn_far_loss.2} parent=1 // pred_region
      _
    $region57: #{clip_da_all_hn_far_loss.2} parent=1 // pred_fallthru
      _
    // Predicated region
    $region58: #{clip_da_all_hn_far_loss.2} parent=1 // pred_check
      _
    $region59: #{clip_da_all_hn_far_loss.2} parent=1 // pred_check_branch
      %390 = sbr.rel (0) target = $region61
    $region60: #{clip_da_all_hn_far_loss.2} parent=1 // pred_region
      _
    $region61: #{clip_da_all_hn_far_loss.2} parent=1 // pred_fallthru
      _
    // Predicated region
    $region62: #{clip_da_all_hn_far_loss.2} parent=1 // pred_check
      _
    $region63: #{clip_da_all_hn_far_loss.2} parent=1 // pred_check_branch
      %392 = sbr.rel (0) target = $region65
    $region64: #{clip_da_all_hn_far_loss.2} parent=1 // pred_region
      %394 = dma.done [#allocation4], 16
    $region65: #{clip_da_all_hn_far_loss.2} parent=1 // pred_fallthru
      _
    // Predicated region
    $region66: #{clip_da_all_hn_far_loss.2} parent=1 // pred_check
      _
    $region67: #{clip_da_all_hn_far_loss.2} parent=1 // pred_check_branch
      %396 = sbr.rel (0) target = $region69
    $region68: #{clip_da_all_hn_far_loss.2} parent=1 // pred_region
      %398 = dma.done [#allocation6], 16
    $region69: #{clip_da_all_hn_far_loss.2} parent=1 // pred_fallthru
      _
    // Predicated region
    $region70: #{clip_da_all_hn_far_loss.2} parent=1 // pred_check
      _
    $region71: #{clip_da_all_hn_far_loss.2} parent=1 // pred_check_branch
      %400 = sbr.rel (0) target = $region73
    $region72: #{clip_da_all_hn_far_loss.2} parent=1 // pred_region
      %402 = dma.done [#allocation6], 16
    $region73: #{clip_da_all_hn_far_loss.2} parent=1 // pred_fallthru
      _
    // Predicated region
    $region74: #{clip_da_all_hn_far_loss.2} parent=1 // pred_check
      _
    $region75: #{clip_da_all_hn_far_loss.2} parent=1 // pred_check_branch
      %404 = sbr.rel (0) target = $region77
    $region76: #{clip_da_all_hn_far_loss.2} parent=1 // pred_region
      %406 = dma.done [#allocation9], 16
    $region77: #{clip_da_all_hn_far_loss.2} parent=1 // pred_fallthru
      _
    // Predicated region
    $region78: #{clip_da_all_hn_far_loss.2} parent=1 // pred_check
      _
    $region79: #{clip_da_all_hn_far_loss.2} parent=1 // pred_check_branch
      %408 = sbr.rel (0) target = $region81
    $region80: #{clip_da_all_hn_far_loss.2} parent=1 // pred_region
      _
    $region81: #{clip_da_all_hn_far_loss.2} parent=1 // pred_fallthru
      _
    // Predicated region
    $region82: #{clip_da_all_hn_far_loss.2} parent=1 // pred_check
      _
    $region83: #{clip_da_all_hn_far_loss.2} parent=1 // pred_check_branch
      %410 = sbr.rel (0) target = $region85
    $region84: #{clip_da_all_hn_far_loss.2} parent=1 // pred_region
      _
    $region85: #{clip_da_all_hn_far_loss.2} parent=1 // pred_fallthru
      _
    // Predicated region
    $region86: #{clip_da_all_hn_far_loss.2} parent=1 // pred_check
      _
    $region87: #{clip_da_all_hn_far_loss.2} parent=1 // pred_check_branch
      %412 = sbr.rel (0) target = $region89
    $region88: #{clip_da_all_hn_far_loss.2} parent=1 // pred_region
      _
    $region89: #{clip_da_all_hn_far_loss.2} parent=1 // pred_fallthru
      _
    // Predicated region
    $region90: #{clip_da_all_hn_far_loss.2} parent=1 // pred_check
      _
    $region91: #{clip_da_all_hn_far_loss.2} parent=1 // pred_check_branch
      %414 = sbr.rel (0) target = $region93
    $region92: #{clip_da_all_hn_far_loss.2} parent=1 // pred_region
      _
    $region93: #{clip_da_all_hn_far_loss.2} parent=1 // pred_fallthru
      _
    %415 = vsyncpa [#allocation4], 1
    %416 = vsyncpa [#allocation6], 1
    %417 = vsyncpa [#allocation9], 1

</llo_original>
